<compile_context>
chip_gen: v5e
topology: v5e:2x2
jax: 0.10.0
libtpu: 0.0.40
codegen_flags: <defaults>
</compile_context>

<pallas_src>
import functools

import jax
import jax.numpy as jnp
from jax.experimental import pallas as pl
from jax.experimental.pallas import tpu as pltpu

N_FEATURES = 10
HIDDEN_SIZE = 1
NUM_LAYERS = 1      # num_layers == 1 -> no extra hidden Linear+ReLU blocks
ACTIVATE = True     # ReLU after the first Linear
OUT_FEATURES = 2


def _round_up(a, b):
    return (a + b - 1) // b * b


def mlp_kernel(scal_ref, x_ref, w1_ref, o_ref):
    # scal_ref (SMEM, f32[5]): [b1, w2[0,0], w2[0,1], b2[0,0], b2[0,1]]
    # x_ref  (VMEM): (N_FEATURES, TM)   -- features on sublanes, batch on lanes
    # w1_ref (VMEM): (N_FEATURES, 1)    -- resident across grid steps
    # o_ref  (VMEM): (OUT_FEATURES, TM) -- lane-dense output tile
    x = x_ref[...].astype(jnp.float32)
    w1 = w1_ref[...].astype(jnp.float32)              # (N_FEATURES, 1)

    b1 = scal_ref[0]
    w2_0 = scal_ref[1]
    w2_1 = scal_ref[2]
    b2_0 = scal_ref[3]
    b2_1 = scal_ref[4]

    # Layer 1: VPU multiply + cross-sublane (XLU) reduce -- no MXU involved.
    h = jnp.sum(x * w1, axis=0, keepdims=True) + b1   # (1, TM)
    if ACTIVATE:
        h = jnp.maximum(h, 0.0)                       # ReLU

    # Layer 2 (hidden=1 -> 2 outputs) + sigmoid (EUP slot).
    # Two direct, lane-dense row stores -- no concatenate / relayout.
    o_ref[0:1, :] = jax.nn.sigmoid(h * w2_0 + b2_0).astype(o_ref.dtype)
    o_ref[1:2, :] = jax.nn.sigmoid(h * w2_1 + b2_1).astype(o_ref.dtype)


@functools.partial(jax.jit, static_argnames=("tm_max",))
def model_m_forward(x, w1, b1, w2, b2, *, tm_max=32768):
    # Flatten (nn.Flatten): keep batch dim, collapse the rest.
    B = x.shape[0]
    x2d = x.reshape(B, -1)
    assert x2d.shape[1] == N_FEATURES

    # Transposed, lane-dense layout: batch on the lane (last) axis.  The
    # transpose is inside this jit; allow_input_fusion folds it into the
    # pallas_call's input DMA instead of a separate HBM read+write pass.
    xT = x2d.astype(jnp.float32).T                    # (N_FEATURES, B)

    # Pad batch only to lane granularity (128), never to a full tile.
    Bp = _round_up(B, 128)
    if Bp != B:
        xT = jnp.pad(xT, ((0, 0), (0, Bp - B)))

    # Tile size: as large as possible to amortize per-grid-step overhead,
    # but at most ~half the (padded) batch so a v7x dual-TC chip gets >= 2
    # balanced "parallel" tiles.  The last tile may be ragged; its extra
    # lanes are discarded by the crop below.
    tm_max = max(128, (tm_max // 128) * 128)
    half = _round_up(pl.cdiv(Bp, 2), 128)
    tm = max(128, min(tm_max, half, Bp))
    grid = (pl.cdiv(Bp, tm),)

    # Tiny parameters (b1, w2, b2 -> 5 scalars) packed into one SMEM array.
    scalars = jnp.concatenate([
        jnp.asarray(b1, jnp.float32).reshape(-1),     # (1,)
        jnp.asarray(w2, jnp.float32).reshape(-1),     # (2,)
        jnp.asarray(b2, jnp.float32).reshape(-1),     # (2,)
    ])                                                # (5,)

    outT = pl.pallas_call(
        mlp_kernel,
        out_shape=jax.ShapeDtypeStruct((OUT_FEATURES, Bp), jnp.float32),
        grid=grid,
        in_specs=[
            pl.BlockSpec(memory_space=pltpu.MemorySpace.SMEM),          # scalars
            pl.BlockSpec((N_FEATURES, tm), lambda i: (0, i)),           # xT tile
            pl.BlockSpec((N_FEATURES, HIDDEN_SIZE), lambda i: (0, 0)),  # w1 (resident)
        ],
        out_specs=pl.BlockSpec((OUT_FEATURES, tm), lambda i: (0, i)),
        compiler_params=pltpu.CompilerParams(
            dimension_semantics=("parallel",),          # batch tiles independent
            allow_input_fusion=[False, True, False],    # fuse transpose into x DMA
            vmem_limit_bytes=32 * 1024 * 1024,          # safe on v7x (64 MiB VMEM)
        ),
    )(scalars, xT, w1.astype(jnp.float32))

    # Crop lane padding and return PyTorch layout (B, 2); fused in this jit.
    return outT[:, :B].T


def init_params(key):
    # Deterministic init mimicking nn.Linear's uniform(-1/sqrt(fan_in), 1/sqrt(fan_in)).
    k1, k2, k3, k4 = jax.random.split(key, 4)
    bound1 = 1.0 / jnp.sqrt(N_FEATURES)
    bound2 = 1.0 / jnp.sqrt(HIDDEN_SIZE)
    w1 = jax.random.uniform(k1, (N_FEATURES, HIDDEN_SIZE), jnp.float32, -bound1, bound1)
    b1 = jax.random.uniform(k2, (HIDDEN_SIZE,), jnp.float32, -bound1, bound1)
    w2 = jax.random.uniform(k3, (HIDDEN_SIZE, OUT_FEATURES), jnp.float32, -bound2, bound2)
    b2 = jax.random.uniform(k4, (OUT_FEATURES,), jnp.float32, -bound2, bound2)
    return w1, b1, w2, b2


def reference(x, w1, b1, w2, b2):
    # Pure-JAX reference of Model_m.forward.
    h = jnp.maximum(x.reshape(x.shape[0], -1) @ w1 + b1, 0.0)
    return jax.nn.sigmoid(h @ w2 + b2)


if __name__ == "__main__":
    key = jax.random.PRNGKey(0)
    kx, kp, kx2 = jax.random.split(key, 3)
    w1, b1, w2, b2 = init_params(kp)

    # Small case (single tile; padded lanes are cropped).
    x = jax.random.normal(kx, (8, N_FEATURES), jnp.float32)
    out = jax.block_until_ready(model_m_forward(x, w1, b1, w2, b2))
    assert out.shape == (8, OUT_FEATURES)
    assert jnp.allclose(out, reference(x, w1, b1, w2, b2), atol=1e-5, rtol=1e-5)

    # Multi-tile case with 128-granular padding and a ragged last tile
    # (B=300 -> Bp=384, tm=256, grid=2).
    x2 = jax.random.normal(kx2, (300, N_FEATURES), jnp.float32)
    out2 = jax.block_until_ready(model_m_forward(x2, w1, b1, w2, b2))
    assert out2.shape == (300, OUT_FEATURES)
    assert jnp.allclose(out2, reference(x2, w1, b1, w2, b2), atol=1e-5, rtol=1e-5)

    print("KERNEL_OK")
</pallas_src>

<mosaic_0001>
module attributes {stable_mosaic.version = 11 : i64} {
  func.func @mlp_kernel(%arg0: i32, %arg1: memref<5xf32, #tpu.memory_space<smem>>, %arg2: memref<10x128xf32, #tpu.memory_space<vmem>>, %arg3: memref<10x1xf32, #tpu.memory_space<vmem>>, %arg4: memref<2x128xf32, #tpu.memory_space<vmem>>) attributes {dimension_semantics = [#tpu.dimension_semantics<parallel>], iteration_bounds = array<i64: 1>, scalar_prefetch = 0 : i64, scratch_operands = 0 : i64, tpu.core_type = #tpu.core_type<tc>, window_params = [{transform_indices = @transform_0, window_bounds = array<i64: 5>}, {transform_indices = @transform_1, window_bounds = array<i64: 10, 128>}, {pipeline_mode = #tpu.pipeline_mode<synchronous>, transform_indices = @transform_2, window_bounds = array<i64: 10, 1>}, {transform_indices = @transform_3, window_bounds = array<i64: 2, 128>}]} {
    %c0 = arith.constant 0 : index
    %c0_0 = arith.constant 0 : index
    %0 = vector.load %arg2[%c0, %c0_0] : memref<10x128xf32, #tpu.memory_space<vmem>>, vector<10x128xf32>
    %c0_1 = arith.constant 0 : index
    %c0_2 = arith.constant 0 : index
    %1 = vector.load %arg3[%c0_1, %c0_2] : memref<10x1xf32, #tpu.memory_space<vmem>>, vector<10x1xf32>
    %c0_3 = arith.constant 0 : index
    %2 = memref.load %arg1[%c0_3] : memref<5xf32, #tpu.memory_space<smem>>
    %c1 = arith.constant 1 : index
    %3 = memref.load %arg1[%c1] : memref<5xf32, #tpu.memory_space<smem>>
    %c2 = arith.constant 2 : index
    %4 = memref.load %arg1[%c2] : memref<5xf32, #tpu.memory_space<smem>>
    %c3 = arith.constant 3 : index
    %5 = memref.load %arg1[%c3] : memref<5xf32, #tpu.memory_space<smem>>
    %c4 = arith.constant 4 : index
    %6 = memref.load %arg1[%c4] : memref<5xf32, #tpu.memory_space<smem>>
    %7 = vector.broadcast %1 : vector<10x1xf32> to vector<10x128xf32>
    %8 = arith.mulf %0, %7 : vector<10x128xf32>
    %cst = arith.constant dense<0.000000e+00> : vector<128xf32>
    %9 = vector.multi_reduction <add>, %8, %cst [0] : vector<10x128xf32> to vector<128xf32>
    %10 = vector.shape_cast %9 : vector<128xf32> to vector<1x128xf32>
    %11 = vector.broadcast %2 : f32 to vector<1x128xf32>
    %12 = arith.addf %10, %11 : vector<1x128xf32>
    %cst_4 = arith.constant 0.000000e+00 : f32
    %13 = vector.broadcast %cst_4 : f32 to vector<1x128xf32>
    %14 = arith.maximumf %12, %13 : vector<1x128xf32>
    %15 = vector.broadcast %3 : f32 to vector<1x128xf32>
    %16 = arith.mulf %14, %15 : vector<1x128xf32>
    %17 = vector.broadcast %5 : f32 to vector<1x128xf32>
    %18 = arith.addf %16, %17 : vector<1x128xf32>
    %19 = arith.negf %18 : vector<1x128xf32>
    %20 = math.exp %19 : vector<1x128xf32>
    %cst_5 = arith.constant 1.000000e+00 : f32
    %21 = vector.broadcast %cst_5 : f32 to vector<1x128xf32>
    %22 = arith.addf %21, %20 : vector<1x128xf32>
    %23 = arith.divf %21, %22 : vector<1x128xf32>
    %c0_6 = arith.constant 0 : index
    %c0_7 = arith.constant 0 : index
    %24 = vector.load %arg4[%c0_6, %c0_7] : memref<2x128xf32, #tpu.memory_space<vmem>>, vector<1x128xf32>
    tpu.vector_store %arg4[%c0_6, %c0_7], %23 {strides = array<i32>} : memref<2x128xf32, #tpu.memory_space<vmem>>, vector<1x128xf32>,
    %25 = vector.broadcast %4 : f32 to vector<1x128xf32>
    %26 = arith.mulf %14, %25 : vector<1x128xf32>
    %27 = vector.broadcast %6 : f32 to vector<1x128xf32>
    %28 = arith.addf %26, %27 : vector<1x128xf32>
    %29 = arith.negf %28 : vector<1x128xf32>
    %30 = math.exp %29 : vector<1x128xf32>
    %cst_8 = arith.constant 1.000000e+00 : f32
    %31 = vector.broadcast %cst_8 : f32 to vector<1x128xf32>
    %32 = arith.addf %31, %30 : vector<1x128xf32>
    %33 = arith.divf %31, %32 : vector<1x128xf32>
    %c1_9 = arith.constant 1 : index
    %c0_10 = arith.constant 0 : index
    %34 = vector.load %arg4[%c1_9, %c0_10] : memref<2x128xf32, #tpu.memory_space<vmem>>, vector<1x128xf32>
    tpu.vector_store %arg4[%c1_9, %c0_10], %33 {strides = array<i32>} : memref<2x128xf32, #tpu.memory_space<vmem>>, vector<1x128xf32>,
    return
  }
  func.func @transform_0(%arg0: i32) -> i32 {
    %c0_i32 = arith.constant 0 : i32
    %c0_i32_0 = arith.constant 0 : i32
    return %c0_i32 : i32
  }
  func.func @transform_1(%arg0: i32) -> (i32, i32) {
    %c0_i32 = arith.constant 0 : i32
    %c0_i32_0 = arith.constant 0 : i32
    return %c0_i32, %arg0 : i32, i32
  }
  func.func @transform_2(%arg0: i32) -> (i32, i32) {
    %c0_i32 = arith.constant 0 : i32
    %c0_i32_0 = arith.constant 0 : i32
    %c0_i32_1 = arith.constant 0 : i32
    return %c0_i32, %c0_i32_0 : i32, i32
  }
  func.func @transform_3(%arg0: i32) -> (i32, i32) {
    %c0_i32 = arith.constant 0 : i32
    %c0_i32_0 = arith.constant 0 : i32
    return %c0_i32, %arg0 : i32, i32
  }
}

</mosaic_0001>

<llo_original>
// kernel: model_m_forward.2
$region0: #{model_m_forward.2}
  #allocation0 [shape = 'u32[]', space=smem, size = 0x4, offset = 0x4, fixed_abs, tag = 'smem constant byte address 0x4 - core index']
  #allocation1 [shape = 'u32[72,128]{1,0:T(1,128)}', space=vmem, size = 0x9000, scoped, tag = 'internal scratch']
  #allocation2 [shape = 'u32[2048]{0}', space=vmem, size = 0x2000, scoped, tag = 'scoped memory for model_m_forward.2']
  #allocation3 [shape = 'u32[2048]{0}', space=vmem, size = 0x2000, scoped, tag = 'scoped memory for model_m_forward.2']
  #allocation4 [shape = 'u32[2048]{0}', space=vmem, size = 0x2000, scoped, tag = 'scoped memory for model_m_forward.2']
  #allocation5 [shape = 'u32[2048]{0}', space=vmem, size = 0x2000, scoped, tag = 'scoped memory for model_m_forward.2']
  #allocation6 [shape = 'u32[2048]{0}', space=vmem, size = 0x2000, scoped, tag = 'scoped memory for model_m_forward.2']
  %s0 = inlined_call_operand.vmem [shape: f32[5], index: 0, kind: input, shape index: {}]
  %s1 = inlined_call_operand.vmem [shape: f32[10,1], index: 1, kind: input, shape index: {}]
  %s2 = inlined_call_operand.vmem [shape: f32[10,8], index: 2, kind: input, shape index: {}]
  %s3 = inlined_call_operand.<no memory space> [shape: f32[], index: 3, kind: input, shape index: {}]
  %s4 = inlined_call_operand.vmem [shape: f32[2,128], index: 4, kind: output, shape index: {}]
  %s5 = sld [smem:[#allocation0]]
  $region26: #{model_m_forward.2} parent=0
    _
  %s7 = ssub.s32 1, %s5
  %s8 = scalar_select 0, %s7, %s5
  %v9 = vstv %s3
  $region1: #{model_m_forward.2} parent=0
    #allocation7 [shape = 'u8[512]{0}', space=smem, size = 0x200, scoped, tag = 'input window, operand 0, single buffered']
    #allocation8 [shape = 's32[1]{0}', space=sflag, size = 0x4, scoped, tag = 'scoped memory for model_m_forward.2']
    #allocation9 [shape = 'u8[8192]{0}', space=vmem, size = 0x2000, dematerialized = true, scoped, tag = 'FusionAdapter Buffer %fusion.1 = f32[10,128]{1,0:T(8,128)} fusion(%param_2.1, %param_3), kind=kLoop, calls=%fused_computation.1.clone, metadata={op_name="jit(model_m_forward)/jit(_pad)/pad" stack_frame_id=8}']
    %10 = vsyncpa [#allocation8], 0
    // Predicated region
    $region2: #{model_m_forward.2} parent=1 // pred_check
      _
    $region3: #{model_m_forward.2} parent=1 // pred_check_branch
      %12 = sbr.rel (0) target = $region5
    $region4: #{model_m_forward.2} parent=1 // pred_region
      %14 = vsyncadd [#allocation8], 0
      %s16 = sshll.u32 %s0, 4
      %s17 = int_to_ptr.vmem [resolvable:$true] %s16
      %19 = dma.vmem_to_smem %s17, 16, [#allocation7], [#allocation8]
    $region5: #{model_m_forward.2} parent=1 // pred_fallthru
      _
    // Predicated region
    $region6: #{model_m_forward.2} parent=1 // pred_check
      _
    $region7: #{model_m_forward.2} parent=1 // pred_check_branch
      %21 = sbr.rel (0) target = $region9
    $region8: #{model_m_forward.2} parent=1 // pred_region
      _
    $region9: #{model_m_forward.2} parent=1 // pred_fallthru
      _
    // Predicated region
    $region10: #{model_m_forward.2} parent=1 // pred_check
      _
    $region11: #{model_m_forward.2} parent=1 // pred_check_branch
      %23 = sbr.rel (0) target = $region13
    $region12: #{model_m_forward.2} parent=1 // pred_region
      _
    $region13: #{model_m_forward.2} parent=1 // pred_fallthru
      _
    // Predicated region
    $region14: #{model_m_forward.2} parent=1 // pred_check
      _
    $region15: #{model_m_forward.2} parent=1 // pred_check_branch
      %25 = sbr.rel (0) target = $region17
    $region16: #{model_m_forward.2} parent=1 // pred_region
      %27 = dma.done [#allocation8], 16
    $region17: #{model_m_forward.2} parent=1 // pred_fallthru
      _
    %28 = sfence
    %v29 = vld [vmem:[%s2] sm:$0xff]
    %v30 = vlaneseq
    %v31 = vshrl.u32 %v30, 7
    %vm33 = vcmp.lt.s32.totalorder %v31, 10
    %v34 = vsel %vm33, %v29, %v9
    %v35 = vlaneseq
    %v36 = vand.u32 %v35, 127
    %vm38 = vcmp.lt.s32.totalorder %v36, 8
    %v39 = vsel %vm38, %v34, %v9
    %s41 = ssub.s32 256, 1
    %42 = vst [vmem:[#allocation9] sm:%s41] %v39
    %s43 = scalar_lea.vmem %s2, 8
    %v44 = vld [vmem:[%s43] sm:$0xff]
    %v45 = vlaneseq
    %v46 = vshrl.u32 %v45, 7
    %v47 = vadd.s32 %v46, 8
    %vm48 = vcmp.lt.s32.totalorder %v47, 10
    %v49 = vsel %vm48, %v44, %v9
    %v50 = vlaneseq
    %v51 = vand.u32 %v50, 127
    %vm53 = vcmp.lt.s32.totalorder %v51, 8
    %v54 = vsel %vm53, %v49, %v9
    %s55 = scalar_lea.vmem [#allocation9], 8
    %s57 = ssub.s32 256, 1
    %58 = vst [vmem:[%s55] sm:%s57] %v54
    %v59 = vld [vmem:[#allocation9] sm:$0xff]
    %v60 = vld [vmem:[#allocation9 + $0x8] sm:$0x3]
    %v61 = vld [vmem:[%s1] sm:$0xff]
    %v62 = vld [vmem:[%s1 + $0x8] sm:$0x3]
    %s63 = sld [smem:[#allocation7]]
    %s64 = sld [smem:[#allocation7 + $0x1]]
    %s65 = sld [smem:[#allocation7 + $0x2]]
    %s66 = sld [smem:[#allocation7 + $0x3]]
    %s67 = sld [smem:[#allocation7 + $0x4]]
    %69 = vset.pattern.permute.xlu0 0
    %70 = vperm.xlu0 %69, %v61
    %v71 = vpop.permute.xlu0 %70
    %74 = vset.pattern.permute.xlu0 0
    %75 = vperm.xlu0 %74, %v62
    %v76 = vpop.permute.xlu0 %75
    %v78 = vmul.f32 %v59, %v71
    %v79 = vmul.f32 %v60, %v76
    %vm80 = vcmask 1041408
    %v81 = vsel %vm80, %v79, 0.0
    %v82 = vadd.f32 %v78, %v81
    %v83 = vrot.slane %v82, 4
    %v84 = vadd.f32 %v82, %v83
    %v85 = vrot.slane %v84, 2
    %v86 = vadd.f32 %v84, %v85
    %v87 = vrot.slane %v86, 1
    %v88 = vadd.f32 %v86, %v87
    %v89 = vstv %s63
    %v90 = vadd.f32 %v88, %v89
    %v91 = vmax.f32 %v90, 0.0
    %v92 = vstv %s64
    %v93 = vmul.f32 %v91, %v92
    %v94 = vstv %s66
    %v95 = vadd.f32 %v93, %v94
    %v96 = vxor.u32 %v95, 2147483648
    %v97 = vmul.f32 %v96, 1.442695
    %v98 = vpow.pop %v97
    %v99 = vadd.f32 %v98, 1.0
    %v100 = vrcp.pop %v99
    %v101 = vmul.f32 %v99, %v100
    %v102 = vsub.f32 1.0, %v101
    %v103 = vmul.f32 %v100, %v102
    %v104 = vadd.f32 %v100, %v103
    %vm105 = vweird.f32 %v99
    %vm106 = vweird.f32 %v100
    %vm107 = vmor %vm105, %vm106
    %v108 = vsel %vm107, %v100, %v104
    %v109 = vand.u32 2147483647, %v99
    %vm110 = vcmp.eq.f32.partialorder %v109, 8.507059e+37
    %v111 = vand.u32 %v99, 2147483648
    %v112 = vor.u32 1.1754944e-38, %v111
    %v113 = vsel %vm110, %v112, %v108
    %v114 = vmul.f32 1.0, %v113
    %115 = vst [vmem:[%s4] sm:$0x1] %v114
    %v116 = vstv %s65
    %v117 = vmul.f32 %v91, %v116
    %v118 = vstv %s67
    %v119 = vadd.f32 %v117, %v118
    %v120 = vxor.u32 %v119, 2147483648
    %v121 = vmul.f32 %v120, 1.442695
    %v122 = vpow.pop %v121
    %v123 = vadd.f32 %v122, 1.0
    %v124 = vrcp.pop %v123
    %v125 = vmul.f32 %v123, %v124
    %v126 = vsub.f32 1.0, %v125
    %v127 = vmul.f32 %v124, %v126
    %v128 = vadd.f32 %v124, %v127
    %vm129 = vweird.f32 %v123
    %vm130 = vweird.f32 %v124
    %vm131 = vmor %vm129, %vm130
    %v132 = vsel %vm131, %v124, %v128
    %v133 = vand.u32 2147483647, %v123
    %vm134 = vcmp.eq.f32.partialorder %v133, 8.507059e+37
    %v135 = vand.u32 %v123, 2147483648
    %v136 = vor.u32 1.1754944e-38, %v135
    %v137 = vsel %vm134, %v136, %v132
    %v138 = vmul.f32 1.0, %v137
    %139 = vst [vmem:[%s4 + $0x1] sm:$0x1] %v138
    // Predicated region
    $region18: #{model_m_forward.2} parent=1 // pred_check
      _
    $region19: #{model_m_forward.2} parent=1 // pred_check_branch
      %141 = sbr.rel (0) target = $region21
    $region20: #{model_m_forward.2} parent=1 // pred_region
      _
    $region21: #{model_m_forward.2} parent=1 // pred_fallthru
      _
    // Predicated region
    $region22: #{model_m_forward.2} parent=1 // pred_check
      _
    $region23: #{model_m_forward.2} parent=1 // pred_check_branch
      %143 = sbr.rel (0) target = $region25
    $region24: #{model_m_forward.2} parent=1 // pred_region
      _
    $region25: #{model_m_forward.2} parent=1 // pred_fallthru
      _
    %144 = vsyncpa [#allocation8], 1

</llo_original>
